<compile_context>
chip_gen: v6e
topology: v6e:2x2x1
jax: 0.10.0
libtpu: 0.0.40
codegen_flags: <defaults>
</compile_context>

<pallas_src>
import functools

import jax
import jax.numpy as jnp
from jax.experimental import pallas as pl
from jax.experimental.pallas import tpu as pltpu


_LANE = 128            # lane width: hidden / output dim padding target
_SUBLANE = 8           # sublane width: batch / input-feature padding target
_MAX_BATCH_TILE = 2048  # rows per batch tile (f32 2048x128 tile ~= 1 MiB)


def _round_up(n, m):
    return ((n + m - 1) // m) * m


class InvalidQNetModelError(Exception):
    def __init__(self, model, *args):
        super().__init__(
            f'The requested model "{model}" is invalid. '
            'Use one between "online" and "target"', *args)


# --------------------------------------------------------------------------
# Fused 3-layer MLP kernel:  q = relu(relu(x@W1+b1)@W2+b2)@W3+b3
# After the leading "model" axis of every parameter is squeezed by its
# BlockSpec, the refs are:
#   x_ref  : (tile_b, d_in)   f32
#   wN_ref : (d_*, d_*)       bf16   (lane-dense last dim)
#   bN_ref : (1, d_*)         f32
#   out_ref: (tile_b, d_out)  f32    (lane-dense, unmasked vst)
# Matmuls run bf16 x bf16 -> f32 accumulation on the MXU; the bias/ReLU
# epilogue stays f32 on the VPU (v5e-safe: no bf16 VPU needed).
# --------------------------------------------------------------------------
def _qnet_mlp_kernel(x_ref, w1_ref, b1_ref, w2_ref, b2_ref, w3_ref, b3_ref,
                     out_ref):
    x = x_ref[...].astype(jnp.bfloat16)

    h1 = jnp.dot(x, w1_ref[...], preferred_element_type=jnp.float32)
    h1 = jnp.maximum(h1 + b1_ref[...], 0.0)

    h2 = jnp.dot(h1.astype(jnp.bfloat16), w2_ref[...],
                 preferred_element_type=jnp.float32)
    h2 = jnp.maximum(h2 + b2_ref[...], 0.0)

    q = jnp.dot(h2.astype(jnp.bfloat16), w3_ref[...],
                preferred_element_type=jnp.float32)
    out_ref[...] = (q + b3_ref[...]).astype(out_ref.dtype)


@functools.lru_cache(maxsize=None)
def _build_qnet_call(num_models, grid_b, tile_b, d_in, d_hid, d_out):
    """Build (once per shape) the pallas_call for the padded, stacked MLP."""
    batch_pad = grid_b * tile_b
    grid = (num_models, grid_b)

    in_specs = [
        # x: shared across models, tiled over the batch axis.  Last block dim
        # equals the full (8-padded) feature extent, so no 128 padding needed.
        pl.BlockSpec((tile_b, d_in), lambda m, b: (b, 0)),
        # Weights/biases: constant batch index_map -> resident in VMEM across
        # batch tiles; leading model axis squeezed (None).
        pl.BlockSpec((None, d_in, d_hid),  lambda m, b: (m, 0, 0)),
        pl.BlockSpec((None, 1, d_hid),     lambda m, b: (m, 0, 0)),
        pl.BlockSpec((None, d_hid, d_hid), lambda m, b: (m, 0, 0)),
        pl.BlockSpec((None, 1, d_hid),     lambda m, b: (m, 0, 0)),
        pl.BlockSpec((None, d_hid, d_out), lambda m, b: (m, 0, 0)),
        pl.BlockSpec((None, 1, d_out),     lambda m, b: (m, 0, 0)),
    ]
    out_specs = pl.BlockSpec((None, tile_b, d_out), lambda m, b: (m, b, 0))

    # Explicit VMEM budget: double-buffered x/out tiles (f32) + resident
    # (double-buffered) bf16 weights + f32 biases + in-kernel hidden
    # activations, with 2x headroom, capped at the 32 MiB scoped default so
    # the same kernel stays safe on v7x (64 MiB physical).
    act_bytes = 4 * tile_b * (d_in + d_out)
    hid_bytes = (4 + 2) * tile_b * d_hid * 2           # h1/h2 f32 + bf16 casts
    w_bytes = 2 * (d_in * d_hid + d_hid * d_hid + d_hid * d_out)
    b_bytes = 4 * (2 * d_hid + d_out)
    vmem_est = 2 * (act_bytes + w_bytes + b_bytes) + hid_bytes
    vmem_limit = min(max(2 * vmem_est, 8 * 1024 * 1024), 32 * 1024 * 1024)

    return pl.pallas_call(
        _qnet_mlp_kernel,
        out_shape=jax.ShapeDtypeStruct((num_models, batch_pad, d_out),
                                       jnp.float32),
        grid=grid,
        in_specs=in_specs,
        out_specs=out_specs,
        compiler_params=pltpu.CompilerParams(
            # model axis and batch axis are independent -> megacore sharding.
            dimension_semantics=("parallel", "parallel"),
            vmem_limit_bytes=vmem_limit,
        ),
    )


@functools.partial(jax.jit, static_argnames=("n_actions",))
def _qnet_forward(x, w1, b1, w2, b2, w3, b3, *, n_actions):
    """(Minimal) pad -> fused Pallas MLP over (model, batch-tile) grid -> slice."""
    batch, feat = x.shape
    num_models, d_in, d_hid = w1.shape
    d_out = w3.shape[2]

    # Batch tiling: pad only to a multiple of 8; split into exactly grid_b
    # tiles.  When a single parameter set is run, force >= 2 tiles (when the
    # batch allows) so both v7x TensorCores get work.
    batch_pad8 = _round_up(batch, _SUBLANE)
    min_tiles = 2 if (num_models == 1 and batch_pad8 >= 2 * _SUBLANE) else 1
    grid_b = max(min_tiles, pl.cdiv(batch_pad8, _MAX_BATCH_TILE))
    tile_b = _round_up(pl.cdiv(batch_pad8, grid_b), _SUBLANE)
    batch_pad = grid_b * tile_b

    x_p = x.astype(jnp.float32)
    if batch_pad != batch or d_in != feat:
        x_p = jnp.pad(x_p, ((0, batch_pad - batch), (0, d_in - feat)))

    call = _build_qnet_call(num_models, grid_b, tile_b, d_in, d_hid, d_out)
    q = call(x_p, w1, b1, w2, b2, w3, b3)
    if batch_pad != batch or d_out != n_actions:
        q = q[:, :batch, :n_actions]       # (num_models, batch, n_actions)
    return q


class QNetPallas:
    """JAX/Pallas equivalent of prorl's QNet wrapper (online + frozen target)."""

    def __init__(self, state_dim, hidden_dim, n_actions, key):
        self.state_dim = state_dim
        self.hidden_dim = hidden_dim
        self.n_actions = n_actions
        # Storage dims: input padded to sublane multiple only; hidden/output
        # lane-padded so matmul tiles and the output store are lane-dense.
        self._d_in = _round_up(state_dim, _SUBLANE)
        self._d_hid = _round_up(hidden_dim, _LANE)
        self._d_out = _round_up(n_actions, _LANE)

        self._stacked_cache = {}
        self._online = self._init_params(key)
        self.copy_online_on_target()   # target := deep copy of online

    # ---- parameter pytrees (cache-invalidating properties) ---------------
    @property
    def online(self):
        return self._online

    @online.setter
    def online(self, params):
        self._online = tuple(params)
        self._stacked_cache.clear()

    @property
    def target(self):
        return self._target

    @target.setter
    def target(self, params):
        self._target = tuple(params)
        self._stacked_cache.clear()

    # torch.nn.Linear default init: U[-1/sqrt(fan_in), +1/sqrt(fan_in)],
    # stored transposed as (in, out), zero-padded; weights bf16, biases f32.
    def _init_params(self, key):
        def linear(k, fan_in, fan_out, pad_in, pad_out):
            kw, kb = jax.random.split(k)
            bound = 1.0 / float(fan_in) ** 0.5
            w = jax.random.uniform(kw, (fan_in, fan_out), jnp.float32,
                                   -bound, bound)
            b = jax.random.uniform(kb, (1, fan_out), jnp.float32,
                                   -bound, bound)
            w = jnp.pad(w, ((0, pad_in - fan_in), (0, pad_out - fan_out)))
            b = jnp.pad(b, ((0, 0), (0, pad_out - fan_out)))
            return w.astype(jnp.bfloat16), b

        k1, k2, k3 = jax.random.split(key, 3)
        w1, b1 = linear(k1, self.state_dim, self.hidden_dim,
                        self._d_in, self._d_hid)
        w2, b2 = linear(k2, self.hidden_dim, self.hidden_dim,
                        self._d_hid, self._d_hid)
        w3, b3 = linear(k3, self.hidden_dim, self.n_actions,
                        self._d_hid, self._d_out)
        return (w1, b1, w2, b2, w3, b3)

    def copy_online_on_target(self):
        # JAX arrays are immutable -> copying the pytree is a deep copy.
        self.target = tuple(jnp.array(p) for p in self._online)

    def _stacked(self, model):
        cached = self._stacked_cache.get(model)
        if cached is not None:
            return cached
        if model == "online":
            sets = (self._online,)
        elif model == "target":
            sets = (self._target,)
        elif model == "both":
            sets = (self._online, self._target)
        else:
            raise InvalidQNetModelError(model)
        stacked = tuple(jnp.stack(ps) for ps in zip(*sets))
        self._stacked_cache[model] = stacked
        return stacked

    def forward(self, net_input, model="online"):
        if model not in ("online", "target"):
            raise InvalidQNetModelError(model)
        q = _qnet_forward(net_input, *self._stacked(model),
                          n_actions=self.n_actions)
        return q[0]

    __call__ = forward

    def forward_both(self, net_input):
        """Fused online+target evaluation in a single kernel launch."""
        q = _qnet_forward(net_input, *self._stacked("both"),
                          n_actions=self.n_actions)
        return q[0], q[1]

    def count_trainable_parameters(self, model="online"):
        if model != "online" and model != "target":
            raise InvalidQNetModelError(model)
        # Logical (unpadded) parameter count; only 'online' is trainable.
        if model == "target":
            return 0
        sd, hd, na = self.state_dim, self.hidden_dim, self.n_actions
        return (sd * hd + hd) + (hd * hd + hd) + (hd * na + na)

    # TODO(synk): log_weights / export_state / load_model / set_eval /
    # set_train are host-side state management with no kernel equivalent;
    # handle params as plain pytrees (assigning .online/.target clears the
    # stacked-parameter cache automatically).


if __name__ == "__main__":
    # Small shapes consistent with a DQN Q-network forward.
    batch, state_dim, hidden_dim, n_actions = 8, 16, 32, 8

    root = jax.random.PRNGKey(0)
    k_params, k_x, k_x2 = jax.random.split(root, 3)

    qnet = QNetPallas(state_dim, hidden_dim, n_actions, k_params)
    x = jax.random.normal(k_x, (batch, state_dim), dtype=jnp.float32)

    q_online = qnet(x, model="online")
    q_target = qnet(x, model="target")
    q_both_on, q_both_tg = qnet.forward_both(x)
    jax.block_until_ready((q_online, q_target, q_both_on, q_both_tg))

    # Reference matching the kernel's precision recipe (bf16 operands,
    # f32 accumulation / epilogue) on the padded stored params.
    def ref_kernel_precision(x, params, na):
        w1, b1, w2, b2, w3, b3 = params
        d_in = w1.shape[0]
        xp = jnp.pad(x, ((0, 0), (0, d_in - x.shape[1])))

        def mm(a, w):
            return jnp.dot(a.astype(jnp.bfloat16), w,
                           preferred_element_type=jnp.float32)

        h1 = jnp.maximum(mm(xp, w1) + b1, 0.0)
        h2 = jnp.maximum(mm(h1, w2) + b2, 0.0)
        return (mm(h2, w3) + b3)[:, :na]

    # Full-f32 reference on the logical (unpadded, upcast) parameters, to
    # bound the bf16-weight divergence from the original PyTorch math.
    def ref_f32(x, params, sd, hd, na):
        w1, b1, w2, b2, w3, b3 = [p.astype(jnp.float32) for p in params]
        w1, b1 = w1[:sd, :hd], b1[:, :hd]
        w2, b2 = w2[:hd, :hd], b2[:, :hd]
        w3, b3 = w3[:hd, :na], b3[:, :na]
        h1 = jnp.maximum(x @ w1 + b1, 0.0)
        h2 = jnp.maximum(h1 @ w2 + b2, 0.0)
        return h2 @ w3 + b3

    q_ref = ref_kernel_precision(x, qnet.online, n_actions)
    q_ref32 = ref_f32(x, qnet.online, state_dim, hidden_dim, n_actions)
    assert q_online.shape == (batch, n_actions)
    assert jnp.allclose(q_online, q_ref, atol=1e-4)
    assert jnp.allclose(q_online, q_ref32, atol=5e-2)
    # target is an untrained deep copy of online -> identical outputs.
    assert jnp.allclose(q_target, q_online, atol=1e-6)
    # fused online+target launch matches the single-model launches.
    assert jnp.allclose(q_both_on, q_online, atol=1e-6)
    assert jnp.allclose(q_both_tg, q_target, atol=1e-6)

    # Exercise the multi-tile batch path (grid 2x520 for batch=1040:
    # no round-up to a full tile multiple, weights stay VMEM-resident).
    big_batch = 1040
    xb = jax.random.normal(k_x2, (big_batch, state_dim), dtype=jnp.float32)
    qb = qnet(xb, model="online")
    jax.block_until_ready(qb)
    assert qb.shape == (big_batch, n_actions)
    assert jnp.allclose(qb, ref_kernel_precision(xb, qnet.online, n_actions),
                        atol=1e-4)
    assert jnp.allclose(qb, ref_f32(xb, qnet.online, state_dim, hidden_dim,
                                    n_actions), atol=5e-2)

    print("KERNEL_OK")
</pallas_src>

<mosaic_0001>
module attributes {stable_mosaic.version = 11 : i64} {
  func.func @_qnet_mlp_kernel(%arg0: i32, %arg1: i32, %arg2: memref<8x16xf32, #tpu.memory_space<vmem>>, %arg3: memref<1x16x128xbf16, #tpu.memory_space<vmem>>, %arg4: memref<1x1x128xf32, #tpu.memory_space<vmem>>, %arg5: memref<1x128x128xbf16, #tpu.memory_space<vmem>>, %arg6: memref<1x1x128xf32, #tpu.memory_space<vmem>>, %arg7: memref<1x128x128xbf16, #tpu.memory_space<vmem>>, %arg8: memref<1x1x128xf32, #tpu.memory_space<vmem>>, %arg9: memref<1x8x128xf32, #tpu.memory_space<vmem>>) attributes {dimension_semantics = [#tpu.dimension_semantics<parallel>, #tpu.dimension_semantics<parallel>], iteration_bounds = array<i64: 1, 1>, scalar_prefetch = 0 : i64, scratch_operands = 0 : i64, tpu.core_type = #tpu.core_type<tc>, window_params = [{transform_indices = @transform_0, window_bounds = array<i64: 8, 16>}, {transform_indices = @transform_1, window_bounds = array<i64: 1, 16, 128>}, {transform_indices = @transform_2, window_bounds = array<i64: 1, 1, 128>}, {transform_indices = @transform_3, window_bounds = array<i64: 1, 128, 128>}, {transform_indices = @transform_4, window_bounds = array<i64: 1, 1, 128>}, {transform_indices = @transform_5, window_bounds = array<i64: 1, 128, 128>}, {transform_indices = @transform_6, window_bounds = array<i64: 1, 1, 128>}, {transform_indices = @transform_7, window_bounds = array<i64: 1, 8, 128>}]} {
    %c0 = arith.constant 0 : index
    %c0_0 = arith.constant 0 : index
    %0 = vector.load %arg2[%c0, %c0_0] : memref<8x16xf32, #tpu.memory_space<vmem>>, vector<8x16xf32>
    %1 = arith.truncf %0 : vector<8x16xf32> to vector<8x16xbf16>
    %c0_1 = arith.constant 0 : index
    %c0_2 = arith.constant 0 : index
    %c0_3 = arith.constant 0 : index
    %2 = vector.load %arg3[%c0_1, %c0_2, %c0_3] : memref<1x16x128xbf16, #tpu.memory_space<vmem>>, vector<1x16x128xbf16>
    %3 = vector.shape_cast %2 : vector<1x16x128xbf16> to vector<16x128xbf16>
    %cst = arith.constant dense<0.000000e+00> : vector<8x128xf32>
    %4 = tpu.matmul %1, %3, %cst {dimension_numbers = #tpu.dot_dimension_numbers<[1], [0], [0], [1], [0, 0, 1, 1], [], []>} : vector<8x16xbf16>, vector<16x128xbf16>, vector<8x128xf32> -> vector<8x128xf32>
    %c0_4 = arith.constant 0 : index
    %c0_5 = arith.constant 0 : index
    %c0_6 = arith.constant 0 : index
    %5 = vector.load %arg4[%c0_4, %c0_5, %c0_6] : memref<1x1x128xf32, #tpu.memory_space<vmem>>, vector<1x1x128xf32>
    %6 = vector.shape_cast %5 : vector<1x1x128xf32> to vector<1x128xf32>
    %7 = vector.broadcast %6 : vector<1x128xf32> to vector<8x128xf32>
    %8 = arith.addf %4, %7 : vector<8x128xf32>
    %cst_7 = arith.constant 0.000000e+00 : f32
    %9 = vector.broadcast %cst_7 : f32 to vector<8x128xf32>
    %10 = arith.maximumf %8, %9 : vector<8x128xf32>
    %11 = arith.truncf %10 : vector<8x128xf32> to vector<8x128xbf16>
    %c0_8 = arith.constant 0 : index
    %c0_9 = arith.constant 0 : index
    %c0_10 = arith.constant 0 : index
    %12 = vector.load %arg5[%c0_8, %c0_9, %c0_10] : memref<1x128x128xbf16, #tpu.memory_space<vmem>>, vector<1x128x128xbf16>
    %13 = vector.shape_cast %12 : vector<1x128x128xbf16> to vector<128x128xbf16>
    %cst_11 = arith.constant dense<0.000000e+00> : vector<8x128xf32>
    %14 = tpu.matmul %11, %13, %cst_11 {dimension_numbers = #tpu.dot_dimension_numbers<[1], [0], [0], [1], [0, 0, 1, 1], [], []>} : vector<8x128xbf16>, vector<128x128xbf16>, vector<8x128xf32> -> vector<8x128xf32>
    %c0_12 = arith.constant 0 : index
    %c0_13 = arith.constant 0 : index
    %c0_14 = arith.constant 0 : index
    %15 = vector.load %arg6[%c0_12, %c0_13, %c0_14] : memref<1x1x128xf32, #tpu.memory_space<vmem>>, vector<1x1x128xf32>
    %16 = vector.shape_cast %15 : vector<1x1x128xf32> to vector<1x128xf32>
    %17 = vector.broadcast %16 : vector<1x128xf32> to vector<8x128xf32>
    %18 = arith.addf %14, %17 : vector<8x128xf32>
    %cst_15 = arith.constant 0.000000e+00 : f32
    %19 = vector.broadcast %cst_15 : f32 to vector<8x128xf32>
    %20 = arith.maximumf %18, %19 : vector<8x128xf32>
    %21 = arith.truncf %20 : vector<8x128xf32> to vector<8x128xbf16>
    %c0_16 = arith.constant 0 : index
    %c0_17 = arith.constant 0 : index
    %c0_18 = arith.constant 0 : index
    %22 = vector.load %arg7[%c0_16, %c0_17, %c0_18] : memref<1x128x128xbf16, #tpu.memory_space<vmem>>, vector<1x128x128xbf16>
    %23 = vector.shape_cast %22 : vector<1x128x128xbf16> to vector<128x128xbf16>
    %cst_19 = arith.constant dense<0.000000e+00> : vector<8x128xf32>
    %24 = tpu.matmul %21, %23, %cst_19 {dimension_numbers = #tpu.dot_dimension_numbers<[1], [0], [0], [1], [0, 0, 1, 1], [], []>} : vector<8x128xbf16>, vector<128x128xbf16>, vector<8x128xf32> -> vector<8x128xf32>
    %c0_20 = arith.constant 0 : index
    %c0_21 = arith.constant 0 : index
    %c0_22 = arith.constant 0 : index
    %25 = vector.load %arg8[%c0_20, %c0_21, %c0_22] : memref<1x1x128xf32, #tpu.memory_space<vmem>>, vector<1x1x128xf32>
    %26 = vector.shape_cast %25 : vector<1x1x128xf32> to vector<1x128xf32>
    %27 = vector.broadcast %26 : vector<1x128xf32> to vector<8x128xf32>
    %28 = arith.addf %24, %27 : vector<8x128xf32>
    %c0_23 = arith.constant 0 : index
    %c0_24 = arith.constant 0 : index
    %c0_25 = arith.constant 0 : index
    %29 = vector.load %arg9[%c0_23, %c0_24, %c0_25] : memref<1x8x128xf32, #tpu.memory_space<vmem>>, vector<1x8x128xf32>
    %30 = vector.shape_cast %29 : vector<1x8x128xf32> to vector<8x128xf32>
    %31 = vector.shape_cast %28 : vector<8x128xf32> to vector<1x8x128xf32>
    tpu.vector_store %arg9[%c0_23, %c0_24, %c0_25], %31 {strides = array<i32>} : memref<1x8x128xf32, #tpu.memory_space<vmem>>, vector<1x8x128xf32>,
    return
  }
  func.func @transform_0(%arg0: i32, %arg1: i32) -> (i32, i32) {
    %c0_i32 = arith.constant 0 : i32
    %c0_i32_0 = arith.constant 0 : i32
    return %arg1, %c0_i32 : i32, i32
  }
  func.func @transform_1(%arg0: i32, %arg1: i32) -> (i32, i32, i32) {
    %c0_i32 = arith.constant 0 : i32
    %c0_i32_0 = arith.constant 0 : i32
    %c0_i32_1 = arith.constant 0 : i32
    return %arg0, %c0_i32, %c0_i32_0 : i32, i32, i32
  }
  func.func @transform_2(%arg0: i32, %arg1: i32) -> (i32, i32, i32) {
    %c0_i32 = arith.constant 0 : i32
    %c0_i32_0 = arith.constant 0 : i32
    %c0_i32_1 = arith.constant 0 : i32
    return %arg0, %c0_i32, %c0_i32_0 : i32, i32, i32
  }
  func.func @transform_3(%arg0: i32, %arg1: i32) -> (i32, i32, i32) {
    %c0_i32 = arith.constant 0 : i32
    %c0_i32_0 = arith.constant 0 : i32
    %c0_i32_1 = arith.constant 0 : i32
    return %arg0, %c0_i32, %c0_i32_0 : i32, i32, i32
  }
  func.func @transform_4(%arg0: i32, %arg1: i32) -> (i32, i32, i32) {
    %c0_i32 = arith.constant 0 : i32
    %c0_i32_0 = arith.constant 0 : i32
    %c0_i32_1 = arith.constant 0 : i32
    return %arg0, %c0_i32, %c0_i32_0 : i32, i32, i32
  }
  func.func @transform_5(%arg0: i32, %arg1: i32) -> (i32, i32, i32) {
    %c0_i32 = arith.constant 0 : i32
    %c0_i32_0 = arith.constant 0 : i32
    %c0_i32_1 = arith.constant 0 : i32
    return %arg0, %c0_i32, %c0_i32_0 : i32, i32, i32
  }
  func.func @transform_6(%arg0: i32, %arg1: i32) -> (i32, i32, i32) {
    %c0_i32 = arith.constant 0 : i32
    %c0_i32_0 = arith.constant 0 : i32
    %c0_i32_1 = arith.constant 0 : i32
    return %arg0, %c0_i32, %c0_i32_0 : i32, i32, i32
  }
  func.func @transform_7(%arg0: i32, %arg1: i32) -> (i32, i32, i32) {
    %c0_i32 = arith.constant 0 : i32
    %c0_i32_0 = arith.constant 0 : i32
    return %arg0, %arg1, %c0_i32 : i32, i32, i32
  }
}

</mosaic_0001>

<llo_original>
// kernel: _qnet_forward.1
$region0: #{_qnet_forward.1}
  #allocation0 [shape = 'u32[]', space=smem, size = 0x4, offset = 0x4, fixed_abs, tag = 'smem constant byte address 0x4 - core index']
  #allocation1 [shape = 'u32[144,128]{1,0:T(1,128)}', space=vmem, size = 0x12000, scoped, tag = 'internal scratch']
  %s0 = inlined_call_operand.hbm [shape: f32[8,16], index: 0, kind: input, shape index: {}]
  %s1 = inlined_call_operand.hbm [shape: bf16[1,16,128], index: 1, kind: input, shape index: {}]
  %s2 = inlined_call_operand.vmem [shape: f32[1,1,128], index: 2, kind: input, shape index: {}]
  %s3 = inlined_call_operand.hbm [shape: bf16[1,128,128], index: 3, kind: input, shape index: {}]
  %s4 = inlined_call_operand.vmem [shape: f32[1,1,128], index: 4, kind: input, shape index: {}]
  %s5 = inlined_call_operand.hbm [shape: bf16[1,128,128], index: 5, kind: input, shape index: {}]
  %s6 = inlined_call_operand.vmem [shape: f32[1,1,128], index: 6, kind: input, shape index: {}]
  %s7 = inlined_call_operand.hbm [shape: f32[1,8,128], index: 7, kind: output, shape index: {}]
  %s8 = sld [smem:[#allocation0]]
  $region54: #{_qnet_forward.1} parent=0
    _
  %s10 = ssub.s32 1, %s8
  %s11 = scalar_select 0, %s10, %s8
  $region1: #{_qnet_forward.1} parent=0
    #allocation2 [shape = 'u8[4096]{0}', space=vmem, size = 0x1000, scoped, tag = 'input window, operand 0, single buffered']
    #allocation3 [shape = 's32[1]{0}', space=sflag, size = 0x4, scoped, tag = 'scoped memory for _qnet_forward.1']
    #allocation4 [shape = 's32[1]{0}', space=sflag, size = 0x4, scoped, tag = 'scoped memory for _qnet_forward.1']
    #allocation5 [shape = 'u8[4096]{0}', space=vmem, size = 0x1000, scoped, tag = 'input window, operand 1, single buffered']
    #allocation6 [shape = 's32[1]{0}', space=sflag, size = 0x4, scoped, tag = 'scoped memory for _qnet_forward.1']
    #allocation7 [shape = 'u8[32768]{0}', space=vmem, size = 0x8000, scoped, tag = 'input window, operand 3, single buffered']
    #allocation8 [shape = 'u8[32768]{0}', space=vmem, size = 0x8000, scoped, tag = 'input window, operand 5, single buffered']
    #allocation9 [shape = 's32[1]{0}', space=sflag, size = 0x4, scoped, tag = 'scoped memory for _qnet_forward.1']
    #allocation10 [shape = 'u8[4096]{0}', space=vmem, size = 0x1000, scoped, tag = 'output window, operand 0, single buffered']
    %12 = vsyncpa [#allocation3], 0
    %13 = vsyncpa [#allocation6], 0
    %14 = vsyncpa [#allocation9], 0
    %15 = vsyncpa [#allocation4], 0
    // Predicated region
    $region2: #{_qnet_forward.1} parent=1 // pred_check
      _
    $region3: #{_qnet_forward.1} parent=1 // pred_check_branch
      %17 = sbr.rel (0) target = $region5
    $region4: #{_qnet_forward.1} parent=1 // pred_region
      %s19 = ssub.s32 128, 128
      %20 = vsyncadd [#allocation3], %s19
      %s22 = sshll.u32 [#allocation2], 4
      %s23 = int_to_ptr.vmem [resolvable:$true] %s22
      %25 = dma.hbm_to_vmem [thread:$0]  %s0, 128, %s23, [#allocation3]
    $region5: #{_qnet_forward.1} parent=1 // pred_fallthru
      _
    // Predicated region
    $region6: #{_qnet_forward.1} parent=1 // pred_check
      _
    $region7: #{_qnet_forward.1} parent=1 // pred_check_branch
      %27 = sbr.rel (0) target = $region9
    $region8: #{_qnet_forward.1} parent=1 // pred_region
      %s29 = ssub.s32 128, 128
      %30 = vsyncadd [#allocation6], %s29
      %s31 = sshll.u32 [#allocation5], 4
      %s32 = int_to_ptr.vmem [resolvable:$true] %s31
      %37 = dma.hbm_to_vmem [thread:$0]  %s1, 128, %s32, [#allocation6], 64, 64, 4
    $region9: #{_qnet_forward.1} parent=1 // pred_fallthru
      _
    // Predicated region
    $region10: #{_qnet_forward.1} parent=1 // pred_check
      _
    $region11: #{_qnet_forward.1} parent=1 // pred_check_branch
      %39 = sbr.rel (0) target = $region13
    $region12: #{_qnet_forward.1} parent=1 // pred_region
      _
    $region13: #{_qnet_forward.1} parent=1 // pred_fallthru
      _
    // Predicated region
    $region14: #{_qnet_forward.1} parent=1 // pred_check
      _
    $region15: #{_qnet_forward.1} parent=1 // pred_check_branch
      %41 = sbr.rel (0) target = $region17
    $region16: #{_qnet_forward.1} parent=1 // pred_region
      %s43 = ssub.s32 1024, 1024
      %44 = vsyncadd [#allocation6], %s43
      %s45 = sshll.u32 [#allocation7], 4
      %s46 = int_to_ptr.vmem [resolvable:$true] %s45
      %51 = dma.hbm_to_vmem [thread:$0]  %s3, 1024, %s46, [#allocation6], 64, 64, 4
    $region17: #{_qnet_forward.1} parent=1 // pred_fallthru
      _
    // Predicated region
    $region18: #{_qnet_forward.1} parent=1 // pred_check
      _
    $region19: #{_qnet_forward.1} parent=1 // pred_check_branch
      %53 = sbr.rel (0) target = $region21
    $region20: #{_qnet_forward.1} parent=1 // pred_region
      _
    $region21: #{_qnet_forward.1} parent=1 // pred_fallthru
      _
    // Predicated region
    $region22: #{_qnet_forward.1} parent=1 // pred_check
      _
    $region23: #{_qnet_forward.1} parent=1 // pred_check_branch
      %55 = sbr.rel (0) target = $region25
    $region24: #{_qnet_forward.1} parent=1 // pred_region
      %s57 = ssub.s32 1024, 1024
      %58 = vsyncadd [#allocation9], %s57
      %s59 = sshll.u32 [#allocation8], 4
      %s60 = int_to_ptr.vmem [resolvable:$true] %s59
      %65 = dma.hbm_to_vmem [thread:$0]  %s5, 1024, %s60, [#allocation9], 64, 64, 4
    $region25: #{_qnet_forward.1} parent=1 // pred_fallthru
      _
    // Predicated region
    $region26: #{_qnet_forward.1} parent=1 // pred_check
      _
    $region27: #{_qnet_forward.1} parent=1 // pred_check_branch
      %67 = sbr.rel (0) target = $region29
    $region28: #{_qnet_forward.1} parent=1 // pred_region
      _
    $region29: #{_qnet_forward.1} parent=1 // pred_fallthru
      _
    // Predicated region
    $region30: #{_qnet_forward.1} parent=1 // pred_check
      _
    $region31: #{_qnet_forward.1} parent=1 // pred_check_branch
      %69 = sbr.rel (0) target = $region33
    $region32: #{_qnet_forward.1} parent=1 // pred_region
      %70 = dma.done [#allocation3], 128
    $region33: #{_qnet_forward.1} parent=1 // pred_fallthru
      _
    // Predicated region
    $region34: #{_qnet_forward.1} parent=1 // pred_check
      _
    $region35: #{_qnet_forward.1} parent=1 // pred_check_branch
      %72 = sbr.rel (0) target = $region37
    $region36: #{_qnet_forward.1} parent=1 // pred_region
      %73 = dma.done [#allocation6], 128
    $region37: #{_qnet_forward.1} parent=1 // pred_fallthru
      _
    // Predicated region
    $region38: #{_qnet_forward.1} parent=1 // pred_check
      _
    $region39: #{_qnet_forward.1} parent=1 // pred_check_branch
      %75 = sbr.rel (0) target = $region41
    $region40: #{_qnet_forward.1} parent=1 // pred_region
      %76 = dma.done [#allocation6], 1024
    $region41: #{_qnet_forward.1} parent=1 // pred_fallthru
      _
    // Predicated region
    $region42: #{_qnet_forward.1} parent=1 // pred_check
      _
    $region43: #{_qnet_forward.1} parent=1 // pred_check_branch
      %78 = sbr.rel (0) target = $region45
    $region44: #{_qnet_forward.1} parent=1 // pred_region
      %79 = dma.done [#allocation9], 1024
    $region45: #{_qnet_forward.1} parent=1 // pred_fallthru
      _
    %v81 = vld [vmem:[#allocation2] sm:$0xff]
    %v82 = vpack.c.bf16 %v81, %v81
    %v83 = vld [vmem:[#allocation5] sm:$0xf]
    %v84 = vld [vmem:[#allocation5 + $0x4] sm:$0xf]
    %v85 = vld [vmem:[%s2] sm:$0x1]
    %v87 = vlaneseq
    %v88 = vshrl.u32 %v87, 7
    %v89 = vsub.s32 0, %v88
    %v90 = vrot.slane %v85, %v89
    %v94 = vunpack.c.l.b16 %v83
    %v95 = vunpack.c.l.b16 %v84
    %v96 = vpack.c.b16 %v95, %v94
    %vm98 = vcmask 130048
    %v100 = vsel %vm98, %v82, 0
    %102 = vmatprep.subr.bf16.mxu0 0
    %103 = vmatpush1.bf16.msra.mxu0 0
    %104 = vmatprep.subr.bf16.mxu0 0
    %105 = vmatpush1.bf16.msra.mxu0 0
    %106 = vmatprep.subr.bf16.mxu0 0
    %107 = vmatpush1.bf16.msra.mxu0 0
    %108 = vmatprep.subr.bf16.mxu0 0
    %109 = vmatpush1.bf16.msra.mxu0 0
    %110 = vmatprep.subr.bf16.mxu0 0
    %111 = vmatpush1.bf16.msra.mxu0 0
    %112 = vmatprep.subr.bf16.mxu0 0
    %113 = vmatpush1.bf16.msra.mxu0 0
    %114 = vmatprep.subr.bf16.mxu0 0
    %115 = vmatpush1.bf16.msra.mxu0 0
    %116 = vmatprep.subr.bf16.mxu0 0
    %117 = vmatpush1.bf16.msra.mxu0 %v96
    %118 = vmatprep.subr.bf16.mxu0 0
    %119 = vmatpush2.bf16.msra.mxu0 0
    %120 = vmatprep.subr.bf16.mxu0 0
    %121 = vmatpush2.bf16.msra.mxu0 0
    %122 = vmatprep.subr.bf16.mxu0 0
    %123 = vmatpush2.bf16.msra.mxu0 0
    %124 = vmatprep.subr.bf16.mxu0 0
    %125 = vmatpush2.bf16.msra.mxu0 0
    %126 = vmatprep.subr.bf16.mxu0 0
    %127 = vmatpush2.bf16.msra.mxu0 0
    %128 = vmatprep.subr.bf16.mxu0 0
    %129 = vmatpush2.bf16.msra.mxu0 0
    %130 = vmatprep.subr.bf16.mxu0 0
    %131 = vmatpush2.bf16.msra.mxu0 0
    %132 = vmatprep.subr.bf16.mxu0 0
    %133 = vmatpush2.bf16.msra.mxu0 0
    %134 = vmatprep.mubr.bf16.mxu0 0
    %135 = vmatmul.mubr.bf16.gmra.mxu0 %v100
    %v136 = vpop.f32.mrf.mxu0
    %v137 = vadd.f32 %v90, %v136
    %v138 = vpop.f32.mrf.mxu0
    %v139 = vpop.f32.mrf.mxu0
    %v140 = vpop.f32.mrf.mxu0
    %141 = vdwg.mxu0
    %v142 = vmax.f32 %v137, 0.0
    %v143 = vpack.c.bf16 %v142, %v142
    %v144 = vld [vmem:[#allocation7] sm:$0xf]
    %v145 = vld [vmem:[#allocation7 + $0x4] sm:$0xf]
    %v146 = vld [vmem:[#allocation7 + $0x8] sm:$0xf]
    %v147 = vld [vmem:[#allocation7 + $0xc] sm:$0xf]
    %v148 = vld [vmem:[#allocation7 + $0x10] sm:$0xf]
    %v149 = vld [vmem:[#allocation7 + $0x14] sm:$0xf]
    %v150 = vld [vmem:[#allocation7 + $0x18] sm:$0xf]
    %v151 = vld [vmem:[#allocation7 + $0x1c] sm:$0xf]
    %v152 = vld [vmem:[#allocation7 + $0x20] sm:$0xf]
    %v153 = vld [vmem:[#allocation7 + $0x24] sm:$0xf]
    %v154 = vld [vmem:[#allocation7 + $0x28] sm:$0xf]
    %v155 = vld [vmem:[#allocation7 + $0x2c] sm:$0xf]
    %v156 = vld [vmem:[#allocation7 + $0x30] sm:$0xf]
    %v157 = vld [vmem:[#allocation7 + $0x34] sm:$0xf]
    %v158 = vld [vmem:[#allocation7 + $0x38] sm:$0xf]
    %v159 = vld [vmem:[#allocation7 + $0x3c] sm:$0xf]
    %v160 = vld [vmem:[%s4] sm:$0x1]
    %v162 = vlaneseq
    %v163 = vshrl.u32 %v162, 7
    %v164 = vsub.s32 0, %v163
    %v165 = vrot.slane %v160, %v164
    %v183 = vunpack.c.l.b16 %v144
    %v184 = vunpack.c.l.b16 %v145
    %v185 = vunpack.c.l.b16 %v146
    %v186 = vunpack.c.l.b16 %v147
    %v187 = vunpack.c.l.b16 %v148
    %v188 = vunpack.c.l.b16 %v149
    %v189 = vunpack.c.l.b16 %v150
    %v190 = vunpack.c.l.b16 %v151
    %v191 = vunpack.c.l.b16 %v152
    %v192 = vunpack.c.l.b16 %v153
    %v193 = vunpack.c.l.b16 %v154
    %v194 = vunpack.c.l.b16 %v155
    %v195 = vunpack.c.l.b16 %v156
    %v196 = vunpack.c.l.b16 %v157
    %v197 = vunpack.c.l.b16 %v158
    %v198 = vunpack.c.l.b16 %v159
    %v199 = vpack.c.b16 %v184, %v183
    %v200 = vpack.c.b16 %v186, %v185
    %v201 = vpack.c.b16 %v188, %v187
    %v202 = vpack.c.b16 %v190, %v189
    %v203 = vpack.c.b16 %v192, %v191
    %v204 = vpack.c.b16 %v194, %v193
    %v205 = vpack.c.b16 %v196, %v195
    %v206 = vpack.c.b16 %v198, %v197
    %215 = vmatprep.subr.bf16.mxu0 0
    %216 = vmatpush1.bf16.msra.mxu0 %v206
    %217 = vmatprep.subr.bf16.mxu0 0
    %218 = vmatpush1.bf16.msra.mxu0 %v205
    %219 = vmatprep.subr.bf16.mxu0 0
    %220 = vmatpush1.bf16.msra.mxu0 %v204
    %221 = vmatprep.subr.bf16.mxu0 0
    %222 = vmatpush1.bf16.msra.mxu0 %v203
    %223 = vmatprep.subr.bf16.mxu0 0
    %224 = vmatpush1.bf16.msra.mxu0 %v202
    %225 = vmatprep.subr.bf16.mxu0 0
    %226 = vmatpush1.bf16.msra.mxu0 %v201
    %227 = vmatprep.subr.bf16.mxu0 0
    %228 = vmatpush1.bf16.msra.mxu0 %v200
    %229 = vmatprep.subr.bf16.mxu0 0
    %230 = vmatpush1.bf16.msra.mxu0 %v199
    %231 = vmatprep.subr.bf16.mxu0 0
    %232 = vmatpush2.bf16.msra.mxu0 0
    %233 = vmatprep.subr.bf16.mxu0 0
    %234 = vmatpush2.bf16.msra.mxu0 0
    %235 = vmatprep.subr.bf16.mxu0 0
    %236 = vmatpush2.bf16.msra.mxu0 0
    %237 = vmatprep.subr.bf16.mxu0 0
    %238 = vmatpush2.bf16.msra.mxu0 0
    %239 = vmatprep.subr.bf16.mxu0 0
    %240 = vmatpush2.bf16.msra.mxu0 0
    %241 = vmatprep.subr.bf16.mxu0 0
    %242 = vmatpush2.bf16.msra.mxu0 0
    %243 = vmatprep.subr.bf16.mxu0 0
    %244 = vmatpush2.bf16.msra.mxu0 0
    %245 = vmatprep.subr.bf16.mxu0 0
    %246 = vmatpush2.bf16.msra.mxu0 0
    %247 = vmatprep.mubr.bf16.mxu0 0
    %248 = vmatmul.mubr.bf16.gmra.mxu0 %v143
    %v249 = vpop.f32.mrf.mxu0
    %v250 = vadd.f32 %v165, %v249
    %v251 = vpop.f32.mrf.mxu0
    %v252 = vpop.f32.mrf.mxu0
    %v253 = vpop.f32.mrf.mxu0
    %254 = vdwg.mxu0
    %v255 = vmax.f32 %v250, 0.0
    %v256 = vpack.c.bf16 %v255, %v255
    %v257 = vld [vmem:[#allocation8] sm:$0xf]
    %v258 = vld [vmem:[#allocation8 + $0x4] sm:$0xf]
    %v259 = vld [vmem:[#allocation8 + $0x8] sm:$0xf]
    %v260 = vld [vmem:[#allocation8 + $0xc] sm:$0xf]
    %v261 = vld [vmem:[#allocation8 + $0x10] sm:$0xf]
    %v262 = vld [vmem:[#allocation8 + $0x14] sm:$0xf]
    %v263 = vld [vmem:[#allocation8 + $0x18] sm:$0xf]
    %v264 = vld [vmem:[#allocation8 + $0x1c] sm:$0xf]
    %v265 = vld [vmem:[#allocation8 + $0x20] sm:$0xf]
    %v266 = vld [vmem:[#allocation8 + $0x24] sm:$0xf]
    %v267 = vld [vmem:[#allocation8 + $0x28] sm:$0xf]
    %v268 = vld [vmem:[#allocation8 + $0x2c] sm:$0xf]
    %v269 = vld [vmem:[#allocation8 + $0x30] sm:$0xf]
    %v270 = vld [vmem:[#allocation8 + $0x34] sm:$0xf]
    %v271 = vld [vmem:[#allocation8 + $0x38] sm:$0xf]
    %v272 = vld [vmem:[#allocation8 + $0x3c] sm:$0xf]
    %v273 = vld [vmem:[%s6] sm:$0x1]
    %v275 = vlaneseq
    %v276 = vshrl.u32 %v275, 7
    %v277 = vsub.s32 0, %v276
    %v278 = vrot.slane %v273, %v277
    %v296 = vunpack.c.l.b16 %v257
    %v297 = vunpack.c.l.b16 %v258
    %v298 = vunpack.c.l.b16 %v259
    %v299 = vunpack.c.l.b16 %v260
    %v300 = vunpack.c.l.b16 %v261
    %v301 = vunpack.c.l.b16 %v262
    %v302 = vunpack.c.l.b16 %v263
    %v303 = vunpack.c.l.b16 %v264
    %v304 = vunpack.c.l.b16 %v265
    %v305 = vunpack.c.l.b16 %v266
    %v306 = vunpack.c.l.b16 %v267
    %v307 = vunpack.c.l.b16 %v268
    %v308 = vunpack.c.l.b16 %v269
    %v309 = vunpack.c.l.b16 %v270
    %v310 = vunpack.c.l.b16 %v271
    %v311 = vunpack.c.l.b16 %v272
    %v312 = vpack.c.b16 %v297, %v296
    %v313 = vpack.c.b16 %v299, %v298
    %v314 = vpack.c.b16 %v301, %v300
    %v315 = vpack.c.b16 %v303, %v302
    %v316 = vpack.c.b16 %v305, %v304
    %v317 = vpack.c.b16 %v307, %v306
    %v318 = vpack.c.b16 %v309, %v308
    %v319 = vpack.c.b16 %v311, %v310
    %328 = vmatprep.subr.bf16.mxu0 0
    %329 = vmatpush1.bf16.msra.mxu0 %v319
    %330 = vmatprep.subr.bf16.mxu0 0
    %331 = vmatpush1.bf16.msra.mxu0 %v318
    %332 = vmatprep.subr.bf16.mxu0 0
    %333 = vmatpush1.bf16.msra.mxu0 %v317
    %334 = vmatprep.subr.bf16.mxu0 0
    %335 = vmatpush1.bf16.msra.mxu0 %v316
    %336 = vmatprep.subr.bf16.mxu0 0
    %337 = vmatpush1.bf16.msra.mxu0 %v315
    %338 = vmatprep.subr.bf16.mxu0 0
    %339 = vmatpush1.bf16.msra.mxu0 %v314
    %340 = vmatprep.subr.bf16.mxu0 0
    %341 = vmatpush1.bf16.msra.mxu0 %v313
    %342 = vmatprep.subr.bf16.mxu0 0
    %343 = vmatpush1.bf16.msra.mxu0 %v312
    %344 = vmatprep.subr.bf16.mxu0 0
    %345 = vmatpush2.bf16.msra.mxu0 0
    %346 = vmatprep.subr.bf16.mxu0 0
    %347 = vmatpush2.bf16.msra.mxu0 0
    %348 = vmatprep.subr.bf16.mxu0 0
    %349 = vmatpush2.bf16.msra.mxu0 0
    %350 = vmatprep.subr.bf16.mxu0 0
    %351 = vmatpush2.bf16.msra.mxu0 0
    %352 = vmatprep.subr.bf16.mxu0 0
    %353 = vmatpush2.bf16.msra.mxu0 0
    %354 = vmatprep.subr.bf16.mxu0 0
    %355 = vmatpush2.bf16.msra.mxu0 0
    %356 = vmatprep.subr.bf16.mxu0 0
    %357 = vmatpush2.bf16.msra.mxu0 0
    %358 = vmatprep.subr.bf16.mxu0 0
    %359 = vmatpush2.bf16.msra.mxu0 0
    %360 = vmatprep.mubr.bf16.mxu0 0
    %361 = vmatmul.mubr.bf16.gmra.mxu0 %v256
    %v362 = vpop.f32.mrf.mxu0
    %v363 = vadd.f32 %v278, %v362
    %v364 = vpop.f32.mrf.mxu0
    %v365 = vpop.f32.mrf.mxu0
    %v366 = vpop.f32.mrf.mxu0
    %367 = vdwg.mxu0
    %368 = vst [vmem:[#allocation10] sm:$0xff] %v363
    // Predicated region
    $region46: #{_qnet_forward.1} parent=1 // pred_check
      _
    $region47: #{_qnet_forward.1} parent=1 // pred_check_branch
      %370 = sbr.rel (0) target = $region49
    $region48: #{_qnet_forward.1} parent=1 // pred_region
      %s372 = ssub.s32 128, 128
      %373 = vsyncadd [#allocation4], %s372
      %s375 = sshll.u32 [#allocation10], 4
      %s376 = int_to_ptr.vmem [resolvable:$true] %s375
      %378 = dma.vmem_to_hbm [thread:$0]  %s376, 128, %s7, [#allocation4]
    $region49: #{_qnet_forward.1} parent=1 // pred_fallthru
      _
    // Predicated region
    $region50: #{_qnet_forward.1} parent=1 // pred_check
      _
    $region51: #{_qnet_forward.1} parent=1 // pred_check_branch
      %380 = sbr.rel (0) target = $region53
    $region52: #{_qnet_forward.1} parent=1 // pred_region
      %381 = dma.done [#allocation4], 128
    $region53: #{_qnet_forward.1} parent=1 // pred_fallthru
      _
    %382 = vsyncpa [#allocation3], 1
    %383 = vsyncpa [#allocation6], 1
    %384 = vsyncpa [#allocation9], 1
    %385 = vsyncpa [#allocation4], 1

</llo_original>
